<compile_context>
chip_gen: v5e
topology: v5e:2x2
jax: 0.10.0
libtpu: 0.0.40
codegen_flags: <defaults>
</compile_context>

<pallas_src>
import functools

import jax
import jax.numpy as jnp
from jax import lax
from jax.experimental import pallas as pl
from jax.experimental.pallas import tpu as pltpu

# Conservative per-step VMEM budget for the streamed blocks (x + out, each
# double-buffered => 4 x block bytes).  Fits v5e/v6e (128 MiB) and v7x (64 MiB).
_BLOCK_VMEM_BUDGET_BYTES = 40 * 1024 * 1024
_VMEM_LIMIT_BYTES = 56 * 1024 * 1024


def _round_up(n, m):
    return ((n + m - 1) // m) * m


def _channel_attention_kernel(x_ref, w1s_ref, w2_ref, bnb_ref, o_ref, *,
                              scale_factor, hw_true, needs_mask):
    # x_ref block: (Bt, C, HWp) native-dtype stream; upcast to f32 for compute.
    xf = x_ref[...].astype(jnp.float32)                      # (Bt, C, HWp)

    # Adaptive avg pool: zero padding contributes 0; divide by the true HW.
    avg = jnp.sum(xf, axis=-1) * (1.0 / hw_true)             # (Bt, C)

    # Adaptive max pool: mask padded lanes with -inf (static branch).
    if needs_mask:
        idx = lax.broadcasted_iota(jnp.int32, xf.shape, 2)
        xm = jnp.where(idx < hw_true, xf, -jnp.inf)
    else:
        xm = xf
    mx = jnp.max(xm, axis=-1)                                # (Bt, C)

    w1s = w1s_ref[...]                                       # (Cr, C) BN-scale folded
    w2 = w2_ref[...]                                         # (C, Cr)
    bnb = bnb_ref[...]                                       # (1, Cr)

    def mlp(v):                                              # v: (Bt, C) f32
        h = lax.dot_general(v, w1s, (((1,), (1,)), ((), ())),
                            preferred_element_type=jnp.float32)   # (Bt, Cr)
        h = jnp.maximum(h + bnb, 0.0)                        # BN bias + ReLU
        return lax.dot_general(h, w2, (((1,), (1,)), ((), ())),
                               preferred_element_type=jnp.float32)  # (Bt, C)

    logits = (mlp(avg) + mlp(mx)) * scale_factor             # (Bt, C)
    attn = jax.nn.sigmoid(logits)                            # (Bt, C)

    # Multiply in f32 (v5e has no bf16 VPU), cast back to the stream dtype.
    o_ref[...] = (xf * attn[:, :, None]).astype(o_ref.dtype)


def channel_attention(x_nchw, w1, w2, bn_scale, bn_shift, *, scale_factor=1.0):
    """x_nchw: (B, C, H, W).  Returns (B, C, H, W) in the input dtype."""
    B, C, H, W = x_nchw.shape
    HW = H * W
    HWp = _round_up(HW, 128)
    Cr = w1.shape[0]
    dtype = x_nchw.dtype
    itemsize = jnp.dtype(dtype).itemsize

    # Fold BN scale into W1; only bias add + ReLU remain in-kernel.
    w1s = (w1.astype(jnp.float32) * bn_scale.reshape(Cr, 1).astype(jnp.float32))
    bnb = bn_shift.reshape(1, Cr).astype(jnp.float32)
    w2f = w2.astype(jnp.float32)

    # Flatten spatial dims for lane-dense access; pad to a multiple of 128.
    # (The pad is a no-op whenever HW is already 128-aligned.)
    x = x_nchw.reshape(B, C, HW)
    if HWp != HW:
        # TODO(synk): a masked-edge BlockSpec would avoid this extra HBM pass
        # for non-128-aligned spatial sizes.
        x = jnp.pad(x, ((0, 0), (0, 0), (0, HWp - HW)))

    slab_bytes = C * HWp * itemsize                          # one image slab
    if 4 * slab_bytes > _BLOCK_VMEM_BUDGET_BYTES:
        # TODO(synk): two-pass reduce+apply streaming kernel (grid over HW
        # tiles) for images whose single (C, HW) slab exceeds the VMEM budget.
        raise NotImplementedError("image slab exceeds single-pass VMEM budget")

    # Batch block: largest divisor of B within the VMEM budget; keep >= 2 grid
    # steps whenever B > 1 so v7x's two TensorCores both get work.
    max_bt = max(1, _BLOCK_VMEM_BUDGET_BYTES // (4 * slab_bytes))
    bt_cap = max(1, min(max_bt, B if B == 1 else B // 2))
    Bt = 1
    for cand in range(bt_cap, 0, -1):
        if B % cand == 0:
            Bt = cand
            break

    kernel = functools.partial(_channel_attention_kernel,
                               scale_factor=float(scale_factor),
                               hw_true=float(HW),
                               needs_mask=(HWp != HW))

    # Advisory cost: purely bandwidth bound (read + write the x stream).
    cost = pl.CostEstimate(
        flops=3 * B * C * HW + 8 * B * C * Cr,
        transcendentals=B * C,
        bytes_accessed=2 * B * C * HWp * itemsize + 4 * (2 * Cr * C + 2 * Cr),
    )

    out = pl.pallas_call(
        kernel,
        out_shape=jax.ShapeDtypeStruct((B, C, HWp), dtype),
        grid_spec=pltpu.PrefetchScalarGridSpec(
            num_scalar_prefetch=0,
            grid=(B // Bt,),
            in_specs=[
                pl.BlockSpec((Bt, C, HWp), lambda b: (b, 0, 0)),   # x stream
                pl.BlockSpec((Cr, C), lambda b: (0, 0)),           # W1 * bn_scale
                pl.BlockSpec((C, Cr), lambda b: (0, 0)),           # W2
                pl.BlockSpec((1, Cr), lambda b: (0, 0)),           # bn bias
            ],
            out_specs=pl.BlockSpec((Bt, C, HWp), lambda b: (b, 0, 0)),
        ),
        compiler_params=pltpu.CompilerParams(
            dimension_semantics=("parallel",),
            vmem_limit_bytes=_VMEM_LIMIT_BYTES),
        cost_estimate=cost,
    )(x, w1s, w2f, bnb)

    if HWp != HW:
        out = out[:, :, :HW]
    return out.reshape(B, C, H, W)


def _reference(x_nchw, w1, w2, bn_scale, bn_shift, scale_factor):
    avg = jnp.mean(x_nchw, axis=(2, 3))                      # (B, C)
    mx = jnp.max(x_nchw, axis=(2, 3))                        # (B, C)

    def mlp(v):                                              # v: (B, C)
        h = v @ w1.T                                         # (B, Cr)
        h = h * bn_scale + bn_shift
        h = jnp.maximum(h, 0.0)
        return h @ w2.T                                      # (B, C)

    out = mlp(avg) + mlp(mx)
    attn = jax.nn.sigmoid(out * scale_factor)                # (B, C)
    return x_nchw * attn[:, :, None, None]


if __name__ == "__main__":
    # Small shapes consistent with the module (channels divisible by ratio).
    B, C, H, W = 4, 32, 16, 16
    reduction_ratio = 8
    Cr = C // reduction_ratio
    scale_factor = 1.0

    key = jax.random.PRNGKey(0)
    kx, kw1, kw2, kg, kb, km, kv = jax.random.split(key, 7)

    x = jax.random.normal(kx, (B, C, H, W), dtype=jnp.float32)

    # Conv2d(k=1, bias=False) weights -> plain (out, in) matrices.
    w1 = jax.random.normal(kw1, (Cr, C), dtype=jnp.float32) * 0.1
    w2 = jax.random.normal(kw2, (C, Cr), dtype=jnp.float32) * 0.1

    # Deterministic synthetic BatchNorm2d(Cr) parameters (eval mode) folded
    # into an affine scale/shift.
    gamma = 1.0 + 0.1 * jax.random.normal(kg, (Cr,), dtype=jnp.float32)
    beta = 0.1 * jax.random.normal(kb, (Cr,), dtype=jnp.float32)
    running_mean = 0.1 * jax.random.normal(km, (Cr,), dtype=jnp.float32)
    running_var = jnp.abs(1.0 + 0.1 * jax.random.normal(kv, (Cr,), dtype=jnp.float32))
    eps = 1e-5
    inv_std = 1.0 / jnp.sqrt(running_var + eps)
    bn_scale = gamma * inv_std                               # (Cr,)
    bn_shift = beta - running_mean * gamma * inv_std         # (Cr,)

    y = channel_attention(x, w1, w2, bn_scale, bn_shift, scale_factor=scale_factor)
    y = jax.block_until_ready(y)

    y_ref = _reference(x, w1, w2, bn_scale, bn_shift, scale_factor)

    assert y.shape == x.shape
    assert y.dtype == x.dtype
    max_err = float(jnp.max(jnp.abs(y - y_ref)))
    assert jnp.allclose(y, y_ref, atol=1e-4, rtol=1e-4), \
        f"mismatch vs JAX reference (max abs err {max_err})"

    print("KERNEL_OK")
</pallas_src>

<mosaic_0001>
module attributes {stable_mosaic.version = 11 : i64} {
  func.func @_channel_attention_kernel(%arg0: i32, %arg1: memref<2x32x256xf32, #tpu.memory_space<vmem>>, %arg2: memref<4x32xf32, #tpu.memory_space<vmem>>, %arg3: memref<32x4xf32, #tpu.memory_space<vmem>>, %arg4: memref<1x4xf32, #tpu.memory_space<vmem>>, %arg5: memref<2x32x256xf32, #tpu.memory_space<vmem>>) attributes {dimension_semantics = [#tpu.dimension_semantics<parallel>], iteration_bounds = array<i64: 2>, scalar_prefetch = 0 : i64, scratch_operands = 0 : i64, tpu.core_type = #tpu.core_type<tc>, window_params = [{transform_indices = @transform_0, window_bounds = array<i64: 2, 32, 256>}, {pipeline_mode = #tpu.pipeline_mode<synchronous>, transform_indices = @transform_1, window_bounds = array<i64: 4, 32>}, {pipeline_mode = #tpu.pipeline_mode<synchronous>, transform_indices = @transform_2, window_bounds = array<i64: 32, 4>}, {pipeline_mode = #tpu.pipeline_mode<synchronous>, transform_indices = @transform_3, window_bounds = array<i64: 1, 4>}, {transform_indices = @transform_4, window_bounds = array<i64: 2, 32, 256>}]} {
    %c0 = arith.constant 0 : index
    %c0_0 = arith.constant 0 : index
    %c0_1 = arith.constant 0 : index
    %0 = vector.load %arg1[%c0, %c0_0, %c0_1] : memref<2x32x256xf32, #tpu.memory_space<vmem>>, vector<2x32x256xf32>
    %cst = arith.constant dense<0.000000e+00> : vector<2x32xf32>
    %1 = vector.multi_reduction <add>, %0, %cst [2] : vector<2x32x256xf32> to vector<2x32xf32>
    %cst_2 = arith.constant 3.906250e-03 : f32
    %2 = vector.broadcast %cst_2 : f32 to vector<2x32xf32>
    %3 = arith.mulf %1, %2 : vector<2x32xf32>
    %cst_3 = arith.constant dense<0xFF800000> : vector<2x32xf32>
    %4 = vector.multi_reduction <maximumf>, %0, %cst_3 [2] : vector<2x32x256xf32> to vector<2x32xf32>
    %c0_4 = arith.constant 0 : index
    %c0_5 = arith.constant 0 : index
    %5 = vector.load %arg2[%c0_4, %c0_5] : memref<4x32xf32, #tpu.memory_space<vmem>>, vector<4x32xf32>
    %c0_6 = arith.constant 0 : index
    %c0_7 = arith.constant 0 : index
    %6 = vector.load %arg3[%c0_6, %c0_7] : memref<32x4xf32, #tpu.memory_space<vmem>>, vector<32x4xf32>
    %c0_8 = arith.constant 0 : index
    %c0_9 = arith.constant 0 : index
    %7 = vector.load %arg4[%c0_8, %c0_9] : memref<1x4xf32, #tpu.memory_space<vmem>>, vector<1x4xf32>
    %cst_10 = arith.constant dense<0.000000e+00> : vector<2x4xf32>
    %8 = tpu.matmul %3, %5, %cst_10 {dimension_numbers = #tpu.dot_dimension_numbers<[1], [1], [0], [0], [0, 0, 1, 0], [], []>} : vector<2x32xf32>, vector<4x32xf32>, vector<2x4xf32> -> vector<2x4xf32>
    %9 = vector.broadcast %7 : vector<1x4xf32> to vector<2x4xf32>
    %10 = arith.addf %8, %9 : vector<2x4xf32>
    %cst_11 = arith.constant 0.000000e+00 : f32
    %11 = vector.broadcast %cst_11 : f32 to vector<2x4xf32>
    %12 = arith.maximumf %10, %11 : vector<2x4xf32>
    %cst_12 = arith.constant dense<0.000000e+00> : vector<2x32xf32>
    %13 = tpu.matmul %12, %6, %cst_12 {dimension_numbers = #tpu.dot_dimension_numbers<[1], [1], [0], [0], [0, 0, 1, 0], [], []>} : vector<2x4xf32>, vector<32x4xf32>, vector<2x32xf32> -> vector<2x32xf32>
    %cst_13 = arith.constant dense<0.000000e+00> : vector<2x4xf32>
    %14 = tpu.matmul %4, %5, %cst_13 {dimension_numbers = #tpu.dot_dimension_numbers<[1], [1], [0], [0], [0, 0, 1, 0], [], []>} : vector<2x32xf32>, vector<4x32xf32>, vector<2x4xf32> -> vector<2x4xf32>
    %15 = vector.broadcast %7 : vector<1x4xf32> to vector<2x4xf32>
    %16 = arith.addf %14, %15 : vector<2x4xf32>
    %cst_14 = arith.constant 0.000000e+00 : f32
    %17 = vector.broadcast %cst_14 : f32 to vector<2x4xf32>
    %18 = arith.maximumf %16, %17 : vector<2x4xf32>
    %cst_15 = arith.constant dense<0.000000e+00> : vector<2x32xf32>
    %19 = tpu.matmul %18, %6, %cst_15 {dimension_numbers = #tpu.dot_dimension_numbers<[1], [1], [0], [0], [0, 0, 1, 0], [], []>} : vector<2x4xf32>, vector<32x4xf32>, vector<2x32xf32> -> vector<2x32xf32>
    %20 = arith.addf %13, %19 : vector<2x32xf32>
    %cst_16 = arith.constant 1.000000e+00 : f32
    %21 = vector.broadcast %cst_16 : f32 to vector<2x32xf32>
    %22 = arith.mulf %20, %21 : vector<2x32xf32>
    %23 = arith.negf %22 : vector<2x32xf32>
    %24 = math.exp %23 : vector<2x32xf32>
    %cst_17 = arith.constant 1.000000e+00 : f32
    %25 = vector.broadcast %cst_17 : f32 to vector<2x32xf32>
    %26 = arith.addf %25, %24 : vector<2x32xf32>
    %27 = arith.divf %25, %26 : vector<2x32xf32>
    %28 = vector.shape_cast %27 : vector<2x32xf32> to vector<2x32x1xf32>
    %29 = vector.broadcast %28 : vector<2x32x1xf32> to vector<2x32x256xf32>
    %30 = arith.mulf %0, %29 : vector<2x32x256xf32>
    %c0_18 = arith.constant 0 : index
    %c0_19 = arith.constant 0 : index
    %c0_20 = arith.constant 0 : index
    %31 = vector.load %arg5[%c0_18, %c0_19, %c0_20] : memref<2x32x256xf32, #tpu.memory_space<vmem>>, vector<2x32x256xf32>
    tpu.vector_store %arg5[%c0_18, %c0_19, %c0_20], %30 {strides = array<i32>} : memref<2x32x256xf32, #tpu.memory_space<vmem>>, vector<2x32x256xf32>,
    return
  }
  func.func @transform_0(%arg0: i32) -> (i32, i32, i32) {
    %c0_i32 = arith.constant 0 : i32
    %c0_i32_0 = arith.constant 0 : i32
    %c0_i32_1 = arith.constant 0 : i32
    return %arg0, %c0_i32, %c0_i32_0 : i32, i32, i32
  }
  func.func @transform_1(%arg0: i32) -> (i32, i32) {
    %c0_i32 = arith.constant 0 : i32
    %c0_i32_0 = arith.constant 0 : i32
    %c0_i32_1 = arith.constant 0 : i32
    return %c0_i32, %c0_i32_0 : i32, i32
  }
  func.func @transform_2(%arg0: i32) -> (i32, i32) {
    %c0_i32 = arith.constant 0 : i32
    %c0_i32_0 = arith.constant 0 : i32
    %c0_i32_1 = arith.constant 0 : i32
    return %c0_i32, %c0_i32_0 : i32, i32
  }
  func.func @transform_3(%arg0: i32) -> (i32, i32) {
    %c0_i32 = arith.constant 0 : i32
    %c0_i32_0 = arith.constant 0 : i32
    %c0_i32_1 = arith.constant 0 : i32
    return %c0_i32, %c0_i32_0 : i32, i32
  }
  func.func @transform_4(%arg0: i32) -> (i32, i32, i32) {
    %c0_i32 = arith.constant 0 : i32
    %c0_i32_0 = arith.constant 0 : i32
    %c0_i32_1 = arith.constant 0 : i32
    return %arg0, %c0_i32, %c0_i32_0 : i32, i32, i32
  }
}

</mosaic_0001>

<llo_original>
// kernel: tpu_custom_call.1
$region0: #{tpu_custom_call.1}
  #allocation0 [shape = 'u32[]', space=smem, size = 0x4, offset = 0x4, fixed_abs, tag = 'smem constant byte address 0x4 - core index']
  #allocation1 [shape = 'u32[72,128]{1,0:T(1,128)}', space=vmem, size = 0x9000, scoped, tag = 'internal scratch']
  %s0 = inlined_call_operand.hbm [shape: f32[4,32,256], index: 0, kind: input, shape index: {}]
  %s1 = inlined_call_operand.vmem [shape: f32[4,32], index: 1, kind: input, shape index: {}]
  %s2 = inlined_call_operand.vmem [shape: f32[32,4], index: 2, kind: input, shape index: {}]
  %s3 = inlined_call_operand.vmem [shape: f32[1,4], index: 3, kind: input, shape index: {}]
  %s4 = inlined_call_operand.hbm [shape: f32[4,32,256], index: 4, kind: output, shape index: {}]
  %s5 = sld [smem:[#allocation0]]
  $region53: #{tpu_custom_call.1} parent=0
    _
  %s7 = ssub.s32 1, %s5
  %s8 = scalar_select 0, %s7, %s5
  $region1: #{tpu_custom_call.1} parent=0
    #allocation2 [shape = 'u8[131072]{0}', space=vmem, size = 0x20000, scoped, tag = 'input window, operand 0']
    #allocation3 [shape = 's32[2]{0}', space=sflag, size = 0x8, scoped, tag = 'scoped memory for tpu_custom_call.1']
    #allocation4 [shape = 's32[2]{0}', space=sflag, size = 0x8, scoped, tag = 'scoped memory for tpu_custom_call.1']
    #allocation5 [shape = 'u8[131072]{0}', space=vmem, size = 0x20000, scoped, tag = 'output window, operand 0']
    %9 = vsyncpa [#allocation3], 0
    %s10 = scalar_lea.sflag [#allocation3], 1
    %11 = vsyncpa %s10, 0
    %12 = vsyncpa [#allocation4], 0
    %s13 = scalar_lea.sflag [#allocation4], 1
    %14 = vsyncpa %s13, 0
    loop: start=0, step=1, limit=4
    $region2: #{tpu_custom_call.1} parent=1 // loop_pre_header
      _
    $region3: #{tpu_custom_call.1} parent=1 // loop_header
      %s16 = sphi 0, %s20
      %p17 = scmp.ge.s32.totalorder %s16, 4
      %s26 = sphi 0, %s28
      %s29 = sphi 0, %s26
      %s30 = sphi 0, %s29
      %s46 = sphi 0, %s30
      %s50 = sphi 0, %s50
      %s52 = sphi 0, %s50
      %s53 = sphi 0, %s52
      %s67 = sphi 0, %s53
      %s71 = sphi 0, %s71
      %s73 = sphi 0, %s71
      %s74 = sphi 0, %s73
      %s88 = sphi 0, %s74
      %s92 = sphi 0, %s92
      %s94 = sphi 0, %s92
      %s95 = sphi 0, %s94
      %s109 = sphi 0, %s95
      %s115 = sphi 0, %s117
      %s118 = sphi 0, %s115
      %s119 = sphi 0, %s118
      %s135 = sphi 0, %s119
    $region4: #{tpu_custom_call.1} parent=1 // loop_header_branch
      %19 = sbr.rel (%p17) target = $region8
    $region5: #{tpu_custom_call.1} parent=1 // loop_body
      %s21 = ssub.s32 %s16, 1
      %s22 = ssub.s32 %s16, 2
      %s23 = sadd.s32 %s16, 1
      %s24 = ssub.s32 %s16, %s23
      %p25 = scmp.eq.s32.totalorder %s24, 0
      %s27 = sadd.s32 %s26, 1
      %s28 = scalar_select %p25, %s26, %s27
      %p31 = pneg %p25
      %p32 = scmp.eq.s32.totalorder %s16, 1
      %p33 = por %p31, %p32
      %p34 = scmp.ne.s32.totalorder %s26, %s29
      %p35 = scmp.eq.s32.totalorder %s16, 0
      %p36 = por %p34, %p35
      %p37 = scmp.ne.s32.totalorder %s26, %s29
      %p38 = scmp.eq.s32.totalorder %s21, 1
      %p39 = por %p37, %p38
      %p40 = scmp.ne.s32.totalorder %s29, %s30
      %p41 = scmp.eq.s32.totalorder %s21, 0
      %p42 = por %p40, %p41
      %p43 = scmp.ne.s32.totalorder %s29, %s30
      %p44 = scmp.eq.s32.totalorder %s22, 1
      %p45 = por %p43, %p44
      %p47 = scmp.ne.s32.totalorder %s30, %s46
      %p48 = scmp.eq.s32.totalorder %s22, 0
      %p49 = por %p47, %p48
      %s51 = sadd.s32 %s50, 1
      %p54 = scmp.eq.s32.totalorder %s16, 1
      %p55 = scmp.ne.s32.totalorder %s50, %s52
      %p56 = scmp.eq.s32.totalorder %s16, 0
      %p57 = por %p55, %p56
      %p58 = scmp.ne.s32.totalorder %s50, %s52
      %p59 = scmp.eq.s32.totalorder %s21, 1
      %p60 = por %p58, %p59
      %p61 = scmp.ne.s32.totalorder %s52, %s53
      %p62 = scmp.eq.s32.totalorder %s21, 0
      %p63 = por %p61, %p62
      %p64 = scmp.ne.s32.totalorder %s52, %s53
      %p65 = scmp.eq.s32.totalorder %s22, 1
      %p66 = por %p64, %p65
      %p68 = scmp.ne.s32.totalorder %s53, %s67
      %p69 = scmp.eq.s32.totalorder %s22, 0
      %p70 = por %p68, %p69
      %s72 = sadd.s32 %s71, 1
      %p75 = scmp.eq.s32.totalorder %s16, 1
      %p76 = scmp.ne.s32.totalorder %s71, %s73
      %p77 = scmp.eq.s32.totalorder %s16, 0
      %p78 = por %p76, %p77
      %p79 = scmp.ne.s32.totalorder %s71, %s73
      %p80 = scmp.eq.s32.totalorder %s21, 1
      %p81 = por %p79, %p80
      %p82 = scmp.ne.s32.totalorder %s73, %s74
      %p83 = scmp.eq.s32.totalorder %s21, 0
      %p84 = por %p82, %p83
      %p85 = scmp.ne.s32.totalorder %s73, %s74
      %p86 = scmp.eq.s32.totalorder %s22, 1
      %p87 = por %p85, %p86
      %p89 = scmp.ne.s32.totalorder %s74, %s88
      %p90 = scmp.eq.s32.totalorder %s22, 0
      %p91 = por %p89, %p90
      %s93 = sadd.s32 %s92, 1
      %p96 = scmp.eq.s32.totalorder %s16, 1
      %p97 = scmp.ne.s32.totalorder %s92, %s94
      %p98 = scmp.eq.s32.totalorder %s16, 0
      %p99 = por %p97, %p98
      %p100 = scmp.ne.s32.totalorder %s92, %s94
      %p101 = scmp.eq.s32.totalorder %s21, 1
      %p102 = por %p100, %p101
      %p103 = scmp.ne.s32.totalorder %s94, %s95
      %p104 = scmp.eq.s32.totalorder %s21, 0
      %p105 = por %p103, %p104
      %p106 = scmp.ne.s32.totalorder %s94, %s95
      %p107 = scmp.eq.s32.totalorder %s22, 1
      %p108 = por %p106, %p107
      %p110 = scmp.ne.s32.totalorder %s95, %s109
      %p111 = scmp.eq.s32.totalorder %s22, 0
      %p112 = por %p110, %p111
      %s113 = ssub.s32 %s16, %s23
      %p114 = scmp.eq.s32.totalorder %s113, 0
      %s116 = sadd.s32 %s115, 1
      %s117 = scalar_select %p114, %s115, %s116
      %p120 = pneg %p114
      %p121 = scmp.eq.s32.totalorder %s16, 1
      %p122 = por %p120, %p121
      %p123 = scmp.ne.s32.totalorder %s115, %s118
      %p124 = scmp.eq.s32.totalorder %s16, 0
      %p125 = por %p123, %p124
      %p126 = scmp.ne.s32.totalorder %s115, %s118
      %p127 = scmp.eq.s32.totalorder %s21, 1
      %p128 = por %p126, %p127
      %p129 = scmp.ne.s32.totalorder %s118, %s119
      %p130 = scmp.eq.s32.totalorder %s21, 0
      %p131 = por %p129, %p130
      %p132 = scmp.ne.s32.totalorder %s118, %s119
      %p133 = scmp.eq.s32.totalorder %s22, 1
      %p134 = por %p132, %p133
      %p136 = scmp.ne.s32.totalorder %s119, %s135
      %p137 = scmp.eq.s32.totalorder %s22, 0
      %p138 = por %p136, %p137
      %p139 = scmp.le.s32.totalorder 1, %s16
      %p140 = scmp.lt.s32.totalorder %s16, 3
      %p141 = pnand %p139, %p140
      %p142 = pneg %p141
      // Predicated region
      $region9: #{tpu_custom_call.1} parent=5 // pred_check
        _
      $region10: #{tpu_custom_call.1} parent=5 // pred_check_branch
        %144 = sbr.rel (%p141) target = $region12
      $region11: #{tpu_custom_call.1} parent=5 // pred_region
        %s145 = ssub.s32 %s16, 1
        // Predicated region
        $region13: #{tpu_custom_call.1} parent=11 // pred_check
          %p146 = pneg %p63
        $region14: #{tpu_custom_call.1} parent=11 // pred_check_branch
          %148 = sbr.rel (%p146) target = $region16
        $region15: #{tpu_custom_call.1} parent=11 // pred_region
          _
        $region16: #{tpu_custom_call.1} parent=11 // pred_fallthru
          _
        // Predicated region
        $region17: #{tpu_custom_call.1} parent=11 // pred_check
          %p149 = pneg %p84
        $region18: #{tpu_custom_call.1} parent=11 // pred_check_branch
          %151 = sbr.rel (%p149) target = $region20
        $region19: #{tpu_custom_call.1} parent=11 // pred_region
          _
        $region20: #{tpu_custom_call.1} parent=11 // pred_fallthru
          _
        // Predicated region
        $region21: #{tpu_custom_call.1} parent=11 // pred_check
          %p152 = pneg %p105
        $region22: #{tpu_custom_call.1} parent=11 // pred_check_branch
          %154 = sbr.rel (%p152) target = $region24
        $region23: #{tpu_custom_call.1} parent=11 // pred_region
          _
        $region24: #{tpu_custom_call.1} parent=11 // pred_fallthru
          _
      $region12: #{tpu_custom_call.1} parent=5 // pred_fallthru
        _
      %p155 = scmp.lt.s32.totalorder %s16, 2
      // Predicated region
      $region25: #{tpu_custom_call.1} parent=5 // pred_check
        %p156 = pneg %p155
      $region26: #{tpu_custom_call.1} parent=5 // pred_check_branch
        %158 = sbr.rel (%p156) target = $region28
      $region27: #{tpu_custom_call.1} parent=5 // pred_region
        // Predicated region
        $region29: #{tpu_custom_call.1} parent=27 // pred_check
          %p159 = pneg %p36
        $region30: #{tpu_custom_call.1} parent=27 // pred_check_branch
          %161 = sbr.rel (%p159) target = $region32
        $region31: #{tpu_custom_call.1} parent=27 // pred_region
          %s162 = sand.u32 %s26, 1
          %s163 = scalar_lea.sflag [#allocation3], %s162
          %s164 = sand.u32 %s26, 1
          %s165 = smul.addr %s164, 128
          %s166 = scalar_lea.vmem [#allocation2], %s165
          %s167 = smul.u32 2, %s16
          %169 = vsyncadd %s163, 0
          %s170 = smul.addr %s167, 8
          %s171 = smul.addr %s170, 8
          %s172 = scalar_lea.hbm %s0, %s171
          %s173 = sshll.u32 %s172, 4
          %s174 = int_to_ptr.hbm [resolvable:$true] %s173
          %s175 = sshll.u32 %s166, 4
          %s176 = int_to_ptr.vmem [resolvable:$true] %s175
          %181 = dma.hbm_to_vmem [thread:$0]  %s174, 2048, %s176, %s163, 256, 256, 16
        $region32: #{tpu_custom_call.1} parent=27 // pred_fallthru
          _
      $region28: #{tpu_custom_call.1} parent=5 // pred_fallthru
        _
      %p182 = scmp.le.s32.totalorder 1, %s16
      %p183 = scmp.lt.s32.totalorder %s16, 3
      %p184 = pnand %p182, %p183
      %p185 = pneg %p184
      // Predicated region
      $region33: #{tpu_custom_call.1} parent=5 // pred_check
        _
      $region34: #{tpu_custom_call.1} parent=5 // pred_check_branch
        %187 = sbr.rel (%p184) target = $region36
      $region35: #{tpu_custom_call.1} parent=5 // pred_region
        %s188 = ssub.s32 %s16, 1
        %s189 = sand.u32 %s29, 1
        %s190 = scalar_lea.sflag [#allocation3], %s189
        %s191 = sand.u32 %s29, 1
        %s192 = smul.addr %s191, 128
        %s193 = scalar_lea.vmem [#allocation2], %s192
        // Predicated region
        $region37: #{tpu_custom_call.1} parent=35 // pred_check
          %p194 = pneg %p42
        $region38: #{tpu_custom_call.1} parent=35 // pred_check_branch
          %196 = sbr.rel (%p194) target = $region40
        $region39: #{tpu_custom_call.1} parent=35 // pred_region
          %198 = dma.done %s190, 2048
        $region40: #{tpu_custom_call.1} parent=35 // pred_fallthru
          _
        %s199 = sand.u32 %s29, 1
        %s200 = scalar_lea.sflag [#allocation3], %s199
        %s201 = sand.u32 %s29, 1
        %s202 = smul.addr %s201, 128
        %s203 = scalar_lea.vmem [#allocation2], %s202
        %p204 = pneg %p42
        %p205 = pneg %p39
        %p206 = pneg %p63
        %p207 = pneg %p60
        %p208 = pneg %p84
        %p209 = pneg %p81
        %p210 = pneg %p105
        %p211 = pneg %p102
        %p212 = pneg %p131
        %p213 = pneg %p128
        %s214 = sand.u32 %s118, 1
        %s215 = scalar_lea.sflag [#allocation4], %s214
        %s216 = sand.u32 %s118, 1
        %s217 = smul.addr %s216, 128
        %s218 = scalar_lea.vmem [#allocation5], %s217
        %s219 = smul.u32 2, %s21
        %s220 = smul.u32 2, %s21
        %v221 = vld [vmem:[%s193] sm:$0xff]
        %v222 = vld [vmem:[%s193 + $0x8] sm:$0xff]
        %v223 = vld [vmem:[%s193 + $0x10] sm:$0xff]
        %v224 = vld [vmem:[%s193 + $0x18] sm:$0xff]
        %v225 = vld [vmem:[%s193 + $0x20] sm:$0xff]
        %v226 = vld [vmem:[%s193 + $0x28] sm:$0xff]
        %v227 = vld [vmem:[%s193 + $0x30] sm:$0xff]
        %v228 = vld [vmem:[%s193 + $0x38] sm:$0xff]
        %v229 = vld [vmem:[%s193 + $0x40] sm:$0xff]
        %v230 = vld [vmem:[%s193 + $0x48] sm:$0xff]
        %v231 = vld [vmem:[%s193 + $0x50] sm:$0xff]
        %v232 = vld [vmem:[%s193 + $0x58] sm:$0xff]
        %v233 = vld [vmem:[%s193 + $0x60] sm:$0xff]
        %v234 = vld [vmem:[%s193 + $0x68] sm:$0xff]
        %v235 = vld [vmem:[%s193 + $0x70] sm:$0xff]
        %v236 = vld [vmem:[%s193 + $0x78] sm:$0xff]
        %v237 = vadd.f32 %v221, %v222
        %238 = vadd.xlane.f32.xlu0 %v237
        %v239 = vpop.xlane.xlu0 %238
        %v240 = vadd.f32 %v223, %v224
        %241 = vadd.xlane.f32.xlu0 %v240
        %v242 = vpop.xlane.xlu0 %241
        %v243 = vadd.f32 %v225, %v226
        %244 = vadd.xlane.f32.xlu0 %v243
        %v245 = vpop.xlane.xlu0 %244
        %v246 = vadd.f32 %v227, %v228
        %247 = vadd.xlane.f32.xlu0 %v246
        %v248 = vpop.xlane.xlu0 %247
        %v249 = vadd.f32 %v229, %v230
        %250 = vadd.xlane.f32.xlu0 %v249
        %v251 = vpop.xlane.xlu0 %250
        %v252 = vadd.f32 %v231, %v232
        %253 = vadd.xlane.f32.xlu0 %v252
        %v254 = vpop.xlane.xlu0 %253
        %v255 = vadd.f32 %v233, %v234
        %256 = vadd.xlane.f32.xlu0 %v255
        %v257 = vpop.xlane.xlu0 %256
        %v258 = vadd.f32 %v235, %v236
        %259 = vadd.xlane.f32.xlu0 %v258
        %v260 = vpop.xlane.xlu0 %259
        %v261 = vmul.f32 %v239, 0.00390625
        %v262 = vmul.f32 %v242, 0.00390625
        %v263 = vmul.f32 %v245, 0.00390625
        %v264 = vmul.f32 %v248, 0.00390625
        %v265 = vmul.f32 %v251, 0.00390625
        %v266 = vmul.f32 %v254, 0.00390625
        %v267 = vmul.f32 %v257, 0.00390625
        %v268 = vmul.f32 %v260, 0.00390625
        %v269 = vmax.f32 %v221, %v222
        %270 = vmax.xlane.f32.xlu0 %v269
        %v271 = vpop.xlane.xlu0 %270
        %v272 = vmax.f32 %v223, %v224
        %273 = vmax.xlane.f32.xlu0 %v272
        %v274 = vpop.xlane.xlu0 %273
        %v275 = vmax.f32 %v225, %v226
        %276 = vmax.xlane.f32.xlu0 %v275
        %v277 = vpop.xlane.xlu0 %276
        %v278 = vmax.f32 %v227, %v228
        %279 = vmax.xlane.f32.xlu0 %v278
        %v280 = vpop.xlane.xlu0 %279
        %v281 = vmax.f32 %v229, %v230
        %282 = vmax.xlane.f32.xlu0 %v281
        %v283 = vpop.xlane.xlu0 %282
        %v284 = vmax.f32 %v231, %v232
        %285 = vmax.xlane.f32.xlu0 %v284
        %v286 = vpop.xlane.xlu0 %285
        %v287 = vmax.f32 %v233, %v234
        %288 = vmax.xlane.f32.xlu0 %v287
        %v289 = vpop.xlane.xlu0 %288
        %v290 = vmax.f32 %v235, %v236
        %291 = vmax.xlane.f32.xlu0 %v290
        %v292 = vpop.xlane.xlu0 %291
        %v293 = vld [vmem:[%s1] sm:$0xf]
        %v294 = vld [vmem:[%s2] sm:$0xff]
        %v295 = vld [vmem:[%s2 + $0x8] sm:$0xff]
        %v296 = vld [vmem:[%s2 + $0x10] sm:$0xff]
        %v297 = vld [vmem:[%s2 + $0x18] sm:$0xff]
        %v298 = vld [vmem:[%s3] sm:$0x1]
        %v300 = vperm.slane %v298, 0
        %v310 = vlaneseq
        %v311 = vand.u32 %v310, 127
        %v312 = vperm.slane %v261, %v311
        %v313 = vadd.s32 %v311, 4294967288
        %v314 = vperm.slane %v262, %v313
        %vm315 = vcmask 130112
        %v316 = vsel %vm315, %v314, %v312
        %v317 = vadd.s32 %v311, 4294967280
        %v318 = vperm.slane %v263, %v317
        %vm319 = vcmask 195712
        %v320 = vsel %vm319, %v318, %v316
        %v321 = vadd.s32 %v311, 4294967272
        %v322 = vperm.slane %v264, %v321
        %vm323 = vcmask 261312
        %v324 = vsel %vm323, %v322, %v320
        %v325 = vperm.slane %v265, %v311
        %v326 = vperm.slane %v266, %v313
        %v327 = vsel %vm315, %v326, %v325
        %v328 = vperm.slane %v267, %v317
        %v329 = vsel %vm319, %v328, %v327
        %v330 = vperm.slane %v268, %v321
        %v331 = vsel %vm323, %v330, %v329
        %vm332 = vcmask 1041409
        %v333 = vsel %vm332, %v331, %v324
        %vm334 = vcmask 261120
        %v335 = vsel %vm334, %v333, 0
        %v338 = vsel %vm334, %v293, 0
        %340 = vmatpush.xpose.msra.mxu0 0.0
        %341 = vmatpush.xpose.msra.mxu0 0.0
        %342 = vmatpush.xpose.msra.mxu0 0.0
        %343 = vmatpush.xpose.msra.mxu0 0.0
        %344 = vmatpush.xpose.msra.mxu0 0.0
        %345 = vmatpush.xpose.msra.mxu0 0.0
        %346 = vmatpush.xpose.msra.mxu0 0.0
        %347 = vmatpush.xpose.msra.mxu0 0.0
        %348 = vmatpush.xpose.msra.mxu0 0.0
        %349 = vmatpush.xpose.msra.mxu0 0.0
        %350 = vmatpush.xpose.msra.mxu0 0.0
        %351 = vmatpush.xpose.msra.mxu0 0.0
        %352 = vmatpush.xpose.msra.mxu0 0.0
        %353 = vmatpush.xpose.msra.mxu0 0.0
        %354 = vmatpush.xpose.msra.mxu0 0.0
        %355 = vmatpush.xpose.msra.mxu0 %v338
        %356 = vmatmul.f32.gmra.mxu0 %v335
        %v357 = vpop.f32.mrf.mxu0
        %v358 = vadd.f32 %v300, %v357
        %359 = vdwg.mxu0
        %v360 = vmax.f32 %v358, 0.0
        %v369 = vperm.slane %v271, %v311
        %v370 = vperm.slane %v274, %v313
        %v371 = vsel %vm315, %v370, %v369
        %v372 = vperm.slane %v277, %v317
        %v373 = vsel %vm319, %v372, %v371
        %v374 = vperm.slane %v280, %v321
        %v375 = vsel %vm323, %v374, %v373
        %v376 = vperm.slane %v283, %v311
        %v377 = vperm.slane %v286, %v313
        %v378 = vsel %vm315, %v377, %v376
        %v379 = vperm.slane %v289, %v317
        %v380 = vsel %vm319, %v379, %v378
        %v381 = vperm.slane %v292, %v321
        %v382 = vsel %vm323, %v381, %v380
        %v383 = vsel %vm332, %v382, %v375
        %v384 = vsel %vm334, %v383, 0
        %386 = vmatpush.xpose.msra.mxu0 0.0
        %387 = vmatpush.xpose.msra.mxu0 0.0
        %388 = vmatpush.xpose.msra.mxu0 0.0
        %389 = vmatpush.xpose.msra.mxu0 0.0
        %390 = vmatpush.xpose.msra.mxu0 0.0
        %391 = vmatpush.xpose.msra.mxu0 0.0
        %392 = vmatpush.xpose.msra.mxu0 0.0
        %393 = vmatpush.xpose.msra.mxu0 0.0
        %394 = vmatpush.xpose.msra.mxu0 0.0
        %395 = vmatpush.xpose.msra.mxu0 0.0
        %396 = vmatpush.xpose.msra.mxu0 0.0
        %397 = vmatpush.xpose.msra.mxu0 0.0
        %398 = vmatpush.xpose.msra.mxu0 0.0
        %399 = vmatpush.xpose.msra.mxu0 0.0
        %400 = vmatpush.xpose.msra.mxu0 0.0
        %401 = vmatpush.xpose.msra.mxu0 %v338
        %402 = vmatmul.f32.gmra.mxu0 %v384
        %v403 = vpop.f32.mrf.mxu0
        %v404 = vadd.f32 %v300, %v403
        %405 = vdwg.mxu0
        %v406 = vmax.f32 %v404, 0.0
        %vm407 = vcmask 31744
        %v409 = vsel %vm407, %v406, 0
        %v412 = vsel %vm407, %v294, 0
        %v415 = vsel %vm407, %v295, 0
        %v418 = vsel %vm407, %v296, 0
        %v421 = vsel %vm407, %v297, 0
        %423 = vmatpush.xpose.msra.mxu0 0.0
        %424 = vmatpush.xpose.msra.mxu0 0.0
        %425 = vmatpush.xpose.msra.mxu0 0.0
        %426 = vmatpush.xpose.msra.mxu0 0.0
        %427 = vmatpush.xpose.msra.mxu0 0.0
        %428 = vmatpush.xpose.msra.mxu0 0.0
        %429 = vmatpush.xpose.msra.mxu0 0.0
        %430 = vmatpush.xpose.msra.mxu0 0.0
        %431 = vmatpush.xpose.msra.mxu0 0.0
        %432 = vmatpush.xpose.msra.mxu0 0.0
        %433 = vmatpush.xpose.msra.mxu0 0.0
        %434 = vmatpush.xpose.msra.mxu0 0.0
        %435 = vmatpush.xpose.msra.mxu0 %v421
        %436 = vmatpush.xpose.msra.mxu0 %v418
        %437 = vmatpush.xpose.msra.mxu0 %v415
        %438 = vmatpush.xpose.msra.mxu0 %v412
        %439 = vmatmul.f32.gmra.mxu0 %v409
        %v440 = vpop.f32.mrf.mxu0
        %v441 = vadd.f32 0.0, %v440
        %442 = vdwg.mxu0
        %v444 = vsel %vm407, %v360, 0
        %446 = vmatpush.xpose.msra.mxu0 0.0
        %447 = vmatpush.xpose.msra.mxu0 0.0
        %448 = vmatpush.xpose.msra.mxu0 0.0
        %449 = vmatpush.xpose.msra.mxu0 0.0
        %450 = vmatpush.xpose.msra.mxu0 0.0
        %451 = vmatpush.xpose.msra.mxu0 0.0
        %452 = vmatpush.xpose.msra.mxu0 0.0
        %453 = vmatpush.xpose.msra.mxu0 0.0
        %454 = vmatpush.xpose.msra.mxu0 0.0
        %455 = vmatpush.xpose.msra.mxu0 0.0
        %456 = vmatpush.xpose.msra.mxu0 0.0
        %457 = vmatpush.xpose.msra.mxu0 0.0
        %458 = vmatpush.xpose.msra.mxu0 %v421
        %459 = vmatpush.xpose.msra.mxu0 %v418
        %460 = vmatpush.xpose.msra.mxu0 %v415
        %461 = vmatpush.xpose.msra.mxu0 %v412
        %462 = vmatmul.f32.gmra.mxu0 %v444
        %v463 = vpop.f32.mrf.mxu0
        %v464 = vadd.f32 %v441, %v463
        %465 = vdwg.mxu0
        %v466 = vxor.u32 %v464, 2147483648
        %v467 = vmul.f32 %v466, 1.442695
        %v468 = vpow.pop %v467
        %v469 = vadd.f32 %v468, 1.0
        %v470 = vrcp.pop %v469
        %v471 = vmul.f32 %v469, %v470
        %v472 = vsub.f32 1.0, %v471
        %v473 = vmul.f32 %v470, %v472
        %v474 = vadd.f32 %v470, %v473
        %vm475 = vweird.f32 %v469
        %vm476 = vweird.f32 %v470
        %vm477 = vmor %vm475, %vm476
        %v478 = vsel %vm477, %v470, %v474
        %v479 = vand.u32 2147483647, %v469
        %vm480 = vcmp.eq.f32.partialorder %v479, 8.507059e+37
        %v481 = vand.u32 %v469, 2147483648
        %v482 = vor.u32 1.1754944e-38, %v481
        %v483 = vsel %vm480, %v482, %v478
        %v484 = vmul.f32 1.0, %v483
        %v485 = vperm.slane %v484, 0
        %v486 = vlaneseq
        %v487 = vshrl.u32 %v486, 7
        %489 = vset.pattern.permute.xlu0 %v487
        %490 = vperm.xlu0 %489, %v485
        %v491 = vpop.permute.xlu0 %490
        %v492 = vlaneseq
        %v493 = vshrl.u32 %v492, 7
        %v494 = vadd.s32 %v493, 8
        %495 = vset.pattern.permute.xlu0 %v494
        %496 = vperm.xlu0 %495, %v485
        %v497 = vpop.permute.xlu0 %496
        %v498 = vlaneseq
        %v499 = vshrl.u32 %v498, 7
        %v500 = vadd.s32 %v499, 16
        %501 = vset.pattern.permute.xlu0 %v500
        %502 = vperm.xlu0 %501, %v485
        %v503 = vpop.permute.xlu0 %502
        %v504 = vlaneseq
        %v505 = vshrl.u32 %v504, 7
        %v506 = vadd.s32 %v505, 24
        %507 = vset.pattern.permute.xlu0 %v506
        %508 = vperm.xlu0 %507, %v485
        %v509 = vpop.permute.xlu0 %508
        %v510 = vperm.slane %v484, 1
        %v511 = vlaneseq
        %v512 = vshrl.u32 %v511, 7
        %514 = vset.pattern.permute.xlu0 %v512
        %515 = vperm.xlu0 %514, %v510
        %v516 = vpop.permute.xlu0 %515
        %v517 = vlaneseq
        %v518 = vshrl.u32 %v517, 7
        %v519 = vadd.s32 %v518, 8
        %520 = vset.pattern.permute.xlu0 %v519
        %521 = vperm.xlu0 %520, %v510
        %v522 = vpop.permute.xlu0 %521
        %v523 = vlaneseq
        %v524 = vshrl.u32 %v523, 7
        %v525 = vadd.s32 %v524, 16
        %526 = vset.pattern.permute.xlu0 %v525
        %527 = vperm.xlu0 %526, %v510
        %v528 = vpop.permute.xlu0 %527
        %v529 = vlaneseq
        %v530 = vshrl.u32 %v529, 7
        %v531 = vadd.s32 %v530, 24
        %532 = vset.pattern.permute.xlu0 %v531
        %533 = vperm.xlu0 %532, %v510
        %v534 = vpop.permute.xlu0 %533
        %v535 = vmul.f32 %v221, %v491
        %v536 = vmul.f32 %v222, %v491
        %v537 = vmul.f32 %v223, %v497
        %v538 = vmul.f32 %v224, %v497
        %v539 = vmul.f32 %v225, %v503
        %v540 = vmul.f32 %v226, %v503
        %v541 = vmul.f32 %v227, %v509
        %v542 = vmul.f32 %v228, %v509
        %v543 = vmul.f32 %v229, %v516
        %v544 = vmul.f32 %v230, %v516
        %v545 = vmul.f32 %v231, %v522
        %v546 = vmul.f32 %v232, %v522
        %v547 = vmul.f32 %v233, %v528
        %v548 = vmul.f32 %v234, %v528
        %v549 = vmul.f32 %v235, %v534
        %v550 = vmul.f32 %v236, %v534
        %551 = vst [vmem:[%s218] sm:$0xff] %v535
        %552 = vst [vmem:[%s218 + $0x8] sm:$0xff] %v536
        %553 = vst [vmem:[%s218 + $0x10] sm:$0xff] %v537
        %554 = vst [vmem:[%s218 + $0x18] sm:$0xff] %v538
        %555 = vst [vmem:[%s218 + $0x20] sm:$0xff] %v539
        %556 = vst [vmem:[%s218 + $0x28] sm:$0xff] %v540
        %557 = vst [vmem:[%s218 + $0x30] sm:$0xff] %v541
        %558 = vst [vmem:[%s218 + $0x38] sm:$0xff] %v542
        %559 = vst [vmem:[%s218 + $0x40] sm:$0xff] %v543
        %560 = vst [vmem:[%s218 + $0x48] sm:$0xff] %v544
        %561 = vst [vmem:[%s218 + $0x50] sm:$0xff] %v545
        %562 = vst [vmem:[%s218 + $0x58] sm:$0xff] %v546
        %563 = vst [vmem:[%s218 + $0x60] sm:$0xff] %v547
        %564 = vst [vmem:[%s218 + $0x68] sm:$0xff] %v548
        %565 = vst [vmem:[%s218 + $0x70] sm:$0xff] %v549
        %566 = vst [vmem:[%s218 + $0x78] sm:$0xff] %v550
        %s567 = sand.u32 %s118, 1
        %s568 = scalar_lea.sflag [#allocation4], %s567
        %s569 = sand.u32 %s118, 1
        %s570 = smul.addr %s569, 128
        %s571 = scalar_lea.vmem [#allocation5], %s570
        // Predicated region
        $region41: #{tpu_custom_call.1} parent=35 // pred_check
          %p572 = pneg %p128
        $region42: #{tpu_custom_call.1} parent=35 // pred_check_branch
          %574 = sbr.rel (%p572) target = $region44
        $region43: #{tpu_custom_call.1} parent=35 // pred_region
          %s575 = smul.u32 2, %s21
          %577 = vsyncadd %s568, 0
          %s578 = smul.addr %s575, 8
          %s579 = smul.addr %s578, 8
          %s580 = scalar_lea.hbm %s4, %s579
          %s581 = sshll.u32 %s571, 4
          %s582 = int_to_ptr.vmem [resolvable:$true] %s581
          %s583 = sshll.u32 %s580, 4
          %s584 = int_to_ptr.hbm [resolvable:$true] %s583
          %589 = dma.vmem_to_hbm [thread:$0]  %s582, 2048, %s584, %s568, 256, 256, 16
        $region44: #{tpu_custom_call.1} parent=35 // pred_fallthru
          _
      $region36: #{tpu_custom_call.1} parent=5 // pred_fallthru
        _
      %p590 = scmp.le.s32.totalorder 2, %s16
      // Predicated region
      $region45: #{tpu_custom_call.1} parent=5 // pred_check
        %p591 = pneg %p590
      $region46: #{tpu_custom_call.1} parent=5 // pred_check_branch
        %593 = sbr.rel (%p591) target = $region48
      $region47: #{tpu_custom_call.1} parent=5 // pred_region
        %s594 = ssub.s32 %s16, 2
        // Predicated region
        $region49: #{tpu_custom_call.1} parent=47 // pred_check
          %p595 = pneg %p134
        $region50: #{tpu_custom_call.1} parent=47 // pred_check_branch
          %597 = sbr.rel (%p595) target = $region52
        $region51: #{tpu_custom_call.1} parent=47 // pred_region
          %s598 = sand.u32 %s119, 1
          %s599 = scalar_lea.sflag [#allocation4], %s598
          %s600 = sand.u32 %s119, 1
          %s601 = smul.addr %s600, 128
          %s602 = scalar_lea.vmem [#allocation5], %s601
          %604 = dma.done %s599, 2048
        $region52: #{tpu_custom_call.1} parent=47 // pred_fallthru
          _
      $region48: #{tpu_custom_call.1} parent=5 // pred_fallthru
        _
    $region6: #{tpu_custom_call.1} parent=1 // loop_footer
      %s20 = sadd.s32 1, %s16
    $region7: #{tpu_custom_call.1} parent=1 // loop_footer_branch
      %15 = sbr.rel target = $region3
    $region8: #{tpu_custom_call.1} parent=1 // loop_exit
      _
    %605 = vsyncpa [#allocation3], 1
    %s606 = scalar_lea.sflag [#allocation3], 1
    %607 = vsyncpa %s606, 1
    %608 = vsyncpa [#allocation4], 1
    %s609 = scalar_lea.sflag [#allocation4], 1
    %610 = vsyncpa %s609, 1

</llo_original>
